<compile_context>
chip_gen: v6e
topology: v6e:2x2x1
jax: 0.10.0
libtpu: 0.0.40
codegen_flags: <defaults>
</compile_context>

<pallas_src>
import functools

import jax
import jax.numpy as jnp
from jax import lax
from jax.experimental import pallas as pl
from jax.experimental.pallas import tpu as pltpu


def lstm_fc_kernel(x_ref, wih_ref, whh_ref, b_ref, wfc_ref, bfc_ref,
                   out_ref, hbuf):
    """Runs the full LSTM sequence (batch=1) plus the FC head in one kernel.

    x_ref   : (S, D)      input sequence
    wih_ref : (D, 4H)     input->gates weights (transposed torch weight_ih_l0)
    whh_ref : (H, 4H)     hidden->gates weights (transposed torch weight_hh_l0)
    b_ref   : (1, 4H)     bias_ih + bias_hh
    wfc_ref : (H, O)      fc weight (transposed)
    bfc_ref : (1, O)      fc bias
    out_ref : (S, O)      output
    hbuf    : VMEM (S, H) scratch: hidden state per timestep
    """
    S = x_ref.shape[0]
    H = whh_ref.shape[0]

    # Hot-path matmul #1 (MXU): project the whole sequence through the input
    # weights and fold in the bias. Kept as a register value (tiny).
    xp = (
        jnp.dot(x_ref[...], wih_ref[...], preferred_element_type=jnp.float32)
        + b_ref[...]
    )  # (S, 4H)

    # Hoist the recurrent weight load out of the unrolled loop.
    whh = whh_ref[...]  # (H, 4H)

    h = jnp.zeros((1, H), jnp.float32)
    c = jnp.zeros((1, H), jnp.float32)

    # Fully unrolled recurrence: S is static and tiny, so every index below is
    # a compile-time constant (unmasked addressing, cross-step scheduling).
    # NOTE: explicit MXU residency (pltpu.matmul_push_rhs/acc_lhs/pop) for W_hh
    # was considered but skipped in favor of guaranteed-clean lowering; the
    # unrolled jnp.dot keeps the same weights tile hot across steps.
    for t in range(S):
        # Hot-path matmul #2 (recurrent): h_{t-1} @ W_hh^T.
        gates = xp[t:t + 1, :] + jnp.dot(
            h, whh, preferred_element_type=jnp.float32
        )  # (1, 4H)

        # Two full-vreg transcendentals instead of four sub-slice ones.
        sig = jax.nn.sigmoid(gates)   # (1, 4H)
        th = jnp.tanh(gates)          # (1, 4H)

        i_g = sig[:, 0:H]
        f_g = sig[:, H:2 * H]
        g_g = th[:, 2 * H:3 * H]
        o_g = sig[:, 3 * H:4 * H]

        c = f_g * c + i_g * g_g
        h = o_g * jnp.tanh(c)

        # Static store; not on the serial h/c dependency chain.
        hbuf[t:t + 1, :] = h

    # Hot-path matmul #3 (MXU): FC head over all timesteps at once.
    out_ref[...] = (
        jnp.dot(hbuf[...], wfc_ref[...], preferred_element_type=jnp.float32)
        + bfc_ref[...]
    )


@functools.partial(jax.jit, static_argnames=("hidden_dim", "output_dim"))
def rnn_forward(x, w_ih, w_hh, b_ih, b_hh, w_fc, b_fc, *, hidden_dim, output_dim):
    """Equivalent of RNN.forward(X) for 2-D X of shape (seq, input_dim)."""
    S, D = x.shape
    H, O = hidden_dim, output_dim

    wih_t = jnp.transpose(w_ih)                    # (D, 4H)
    whh_t = jnp.transpose(w_hh)                    # (H, 4H)
    b = (b_ih + b_hh).reshape(1, 4 * H)            # (1, 4H)
    wfc_t = jnp.transpose(w_fc)                    # (H, O)
    bfc = b_fc.reshape(1, O)                       # (1, O)

    grid_spec = pltpu.PrefetchScalarGridSpec(
        num_scalar_prefetch=0,
        grid=(1,),
        in_specs=[
            pl.BlockSpec((S, D), lambda i: (0, 0)),
            pl.BlockSpec((D, 4 * H), lambda i: (0, 0)),
            pl.BlockSpec((H, 4 * H), lambda i: (0, 0)),
            pl.BlockSpec((1, 4 * H), lambda i: (0, 0)),
            pl.BlockSpec((H, O), lambda i: (0, 0)),
            pl.BlockSpec((1, O), lambda i: (0, 0)),
        ],
        out_specs=pl.BlockSpec((S, O), lambda i: (0, 0)),
        scratch_shapes=[
            pltpu.VMEM((S, H), jnp.float32),       # per-step hidden states
        ],
    )

    return pl.pallas_call(
        lstm_fc_kernel,
        out_shape=jax.ShapeDtypeStruct((S, O), jnp.float32),
        grid_spec=grid_spec,
        compiler_params=pltpu.CompilerParams(
            dimension_semantics=("arbitrary",)),
    )(x, wih_t, whh_t, b, wfc_t, bfc)


def rnn_reference(x, w_ih, w_hh, b_ih, b_hh, w_fc, b_fc, hidden_dim):
    """Pure-JAX reference mirroring torch.nn.LSTM + Linear (batch=1)."""
    H = hidden_dim

    def step(carry, x_t):
        h, c = carry
        gates = x_t @ w_ih.T + b_ih + h @ w_hh.T + b_hh
        i = jax.nn.sigmoid(gates[0:H])
        f = jax.nn.sigmoid(gates[H:2 * H])
        g = jnp.tanh(gates[2 * H:3 * H])
        o = jax.nn.sigmoid(gates[3 * H:4 * H])
        c = f * c + i * g
        h = o * jnp.tanh(c)
        return (h, c), h

    h0 = jnp.zeros((H,), jnp.float32)
    c0 = jnp.zeros((H,), jnp.float32)
    _, hs = lax.scan(step, (h0, c0), x)
    return hs @ w_fc.T + b_fc


if __name__ == "__main__":
    seq_len, input_dim, hidden_dim, output_dim = 8, 16, 32, 8

    key = jax.random.PRNGKey(0)
    keys = jax.random.split(key, 7)
    scale = 1.0 / jnp.sqrt(hidden_dim)  # matches torch LSTM/Linear default init range

    x = jax.random.normal(keys[0], (seq_len, input_dim), jnp.float32)
    w_ih = jax.random.uniform(keys[1], (4 * hidden_dim, input_dim), jnp.float32, -scale, scale)
    w_hh = jax.random.uniform(keys[2], (4 * hidden_dim, hidden_dim), jnp.float32, -scale, scale)
    b_ih = jax.random.uniform(keys[3], (4 * hidden_dim,), jnp.float32, -scale, scale)
    b_hh = jax.random.uniform(keys[4], (4 * hidden_dim,), jnp.float32, -scale, scale)
    w_fc = jax.random.uniform(keys[5], (output_dim, hidden_dim), jnp.float32, -scale, scale)
    b_fc = jax.random.uniform(keys[6], (output_dim,), jnp.float32, -scale, scale)

    out = rnn_forward(x, w_ih, w_hh, b_ih, b_hh, w_fc, b_fc,
                      hidden_dim=hidden_dim, output_dim=output_dim)
    out = jax.block_until_ready(out)

    ref = rnn_reference(x, w_ih, w_hh, b_ih, b_hh, w_fc, b_fc, hidden_dim)
    assert out.shape == (seq_len, output_dim)
    assert jnp.allclose(out, ref, atol=1e-5, rtol=1e-5), "mismatch vs JAX reference"

    print("KERNEL_OK")
</pallas_src>

<mosaic_0001>
module attributes {stable_mosaic.version = 11 : i64} {
  func.func @lstm_fc_kernel(%arg0: i32, %arg1: memref<8x16xf32, #tpu.memory_space<vmem>>, %arg2: memref<16x128xf32, #tpu.memory_space<vmem>>, %arg3: memref<32x128xf32, #tpu.memory_space<vmem>>, %arg4: memref<1x128xf32, #tpu.memory_space<vmem>>, %arg5: memref<32x8xf32, #tpu.memory_space<vmem>>, %arg6: memref<1x8xf32, #tpu.memory_space<vmem>>, %arg7: memref<8x8xf32, #tpu.memory_space<vmem>>, %arg8: memref<8x32xf32, #tpu.memory_space<vmem>>) attributes {dimension_semantics = [#tpu.dimension_semantics<arbitrary>], iteration_bounds = array<i64: 1>, scalar_prefetch = 0 : i64, scratch_operands = 1 : i64, tpu.core_type = #tpu.core_type<tc>, window_params = [{pipeline_mode = #tpu.pipeline_mode<synchronous>, transform_indices = @transform_0, window_bounds = array<i64: 8, 16>}, {pipeline_mode = #tpu.pipeline_mode<synchronous>, transform_indices = @transform_1, window_bounds = array<i64: 16, 128>}, {pipeline_mode = #tpu.pipeline_mode<synchronous>, transform_indices = @transform_2, window_bounds = array<i64: 32, 128>}, {pipeline_mode = #tpu.pipeline_mode<synchronous>, transform_indices = @transform_3, window_bounds = array<i64: 1, 128>}, {pipeline_mode = #tpu.pipeline_mode<synchronous>, transform_indices = @transform_4, window_bounds = array<i64: 32, 8>}, {pipeline_mode = #tpu.pipeline_mode<synchronous>, transform_indices = @transform_5, window_bounds = array<i64: 1, 8>}, {pipeline_mode = #tpu.pipeline_mode<synchronous>, transform_indices = @transform_6, window_bounds = array<i64: 8, 8>}]} {
    %c0 = arith.constant 0 : index
    %c0_0 = arith.constant 0 : index
    %0 = vector.load %arg1[%c0, %c0_0] : memref<8x16xf32, #tpu.memory_space<vmem>>, vector<8x16xf32>
    %c0_1 = arith.constant 0 : index
    %c0_2 = arith.constant 0 : index
    %1 = vector.load %arg2[%c0_1, %c0_2] : memref<16x128xf32, #tpu.memory_space<vmem>>, vector<16x128xf32>
    %cst = arith.constant dense<0.000000e+00> : vector<8x128xf32>
    %2 = tpu.matmul %0, %1, %cst {dimension_numbers = #tpu.dot_dimension_numbers<[1], [0], [0], [1], [0, 0, 1, 1], [], []>} : vector<8x16xf32>, vector<16x128xf32>, vector<8x128xf32> -> vector<8x128xf32>
    %c0_3 = arith.constant 0 : index
    %c0_4 = arith.constant 0 : index
    %3 = vector.load %arg4[%c0_3, %c0_4] : memref<1x128xf32, #tpu.memory_space<vmem>>, vector<1x128xf32>
    %4 = vector.broadcast %3 : vector<1x128xf32> to vector<8x128xf32>
    %5 = arith.addf %2, %4 : vector<8x128xf32>
    %c0_5 = arith.constant 0 : index
    %c0_6 = arith.constant 0 : index
    %6 = vector.load %arg3[%c0_5, %c0_6] : memref<32x128xf32, #tpu.memory_space<vmem>>, vector<32x128xf32>
    %cst_7 = arith.constant 0.000000e+00 : f32
    %7 = vector.broadcast %cst_7 : f32 to vector<1x32xf32>
    %cst_8 = arith.constant 0.000000e+00 : f32
    %8 = vector.broadcast %cst_8 : f32 to vector<1x32xf32>
    %9 = vector.extract_strided_slice %5 {offsets = [0, 0], sizes = [1, 128], strides = [1, 1]} : vector<8x128xf32> to vector<1x128xf32>
    %cst_9 = arith.constant dense<0.000000e+00> : vector<1x128xf32>
    %10 = tpu.matmul %7, %6, %cst_9 {dimension_numbers = #tpu.dot_dimension_numbers<[1], [0], [0], [1], [0, 0, 1, 1], [], []>} : vector<1x32xf32>, vector<32x128xf32>, vector<1x128xf32> -> vector<1x128xf32>
    %11 = arith.addf %9, %10 : vector<1x128xf32>
    %12 = arith.negf %11 : vector<1x128xf32>
    %13 = math.exp %12 : vector<1x128xf32>
    %cst_10 = arith.constant 1.000000e+00 : f32
    %14 = vector.broadcast %cst_10 : f32 to vector<1x128xf32>
    %15 = arith.addf %14, %13 : vector<1x128xf32>
    %16 = arith.divf %14, %15 : vector<1x128xf32>
    %17 = math.tanh %11 : vector<1x128xf32>
    %18 = vector.extract_strided_slice %16 {offsets = [0, 0], sizes = [1, 32], strides = [1, 1]} : vector<1x128xf32> to vector<1x32xf32>
    %19 = vector.extract_strided_slice %16 {offsets = [0, 32], sizes = [1, 32], strides = [1, 1]} : vector<1x128xf32> to vector<1x32xf32>
    %20 = vector.extract_strided_slice %17 {offsets = [0, 64], sizes = [1, 32], strides = [1, 1]} : vector<1x128xf32> to vector<1x32xf32>
    %21 = vector.extract_strided_slice %16 {offsets = [0, 96], sizes = [1, 32], strides = [1, 1]} : vector<1x128xf32> to vector<1x32xf32>
    %22 = arith.mulf %19, %8 : vector<1x32xf32>
    %23 = arith.mulf %18, %20 : vector<1x32xf32>
    %24 = arith.addf %22, %23 : vector<1x32xf32>
    %25 = math.tanh %24 : vector<1x32xf32>
    %26 = arith.mulf %21, %25 : vector<1x32xf32>
    %c0_11 = arith.constant 0 : index
    %c0_12 = arith.constant 0 : index
    %27 = vector.load %arg8[%c0_11, %c0_12] : memref<8x32xf32, #tpu.memory_space<vmem>>, vector<1x32xf32>
    tpu.vector_store %arg8[%c0_11, %c0_12], %26 {strides = array<i32>} : memref<8x32xf32, #tpu.memory_space<vmem>>, vector<1x32xf32>,
    %28 = vector.extract_strided_slice %5 {offsets = [1, 0], sizes = [1, 128], strides = [1, 1]} : vector<8x128xf32> to vector<1x128xf32>
    %cst_13 = arith.constant dense<0.000000e+00> : vector<1x128xf32>
    %29 = tpu.matmul %26, %6, %cst_13 {dimension_numbers = #tpu.dot_dimension_numbers<[1], [0], [0], [1], [0, 0, 1, 1], [], []>} : vector<1x32xf32>, vector<32x128xf32>, vector<1x128xf32> -> vector<1x128xf32>
    %30 = arith.addf %28, %29 : vector<1x128xf32>
    %31 = arith.negf %30 : vector<1x128xf32>
    %32 = math.exp %31 : vector<1x128xf32>
    %cst_14 = arith.constant 1.000000e+00 : f32
    %33 = vector.broadcast %cst_14 : f32 to vector<1x128xf32>
    %34 = arith.addf %33, %32 : vector<1x128xf32>
    %35 = arith.divf %33, %34 : vector<1x128xf32>
    %36 = math.tanh %30 : vector<1x128xf32>
    %37 = vector.extract_strided_slice %35 {offsets = [0, 0], sizes = [1, 32], strides = [1, 1]} : vector<1x128xf32> to vector<1x32xf32>
    %38 = vector.extract_strided_slice %35 {offsets = [0, 32], sizes = [1, 32], strides = [1, 1]} : vector<1x128xf32> to vector<1x32xf32>
    %39 = vector.extract_strided_slice %36 {offsets = [0, 64], sizes = [1, 32], strides = [1, 1]} : vector<1x128xf32> to vector<1x32xf32>
    %40 = vector.extract_strided_slice %35 {offsets = [0, 96], sizes = [1, 32], strides = [1, 1]} : vector<1x128xf32> to vector<1x32xf32>
    %41 = arith.mulf %38, %24 : vector<1x32xf32>
    %42 = arith.mulf %37, %39 : vector<1x32xf32>
    %43 = arith.addf %41, %42 : vector<1x32xf32>
    %44 = math.tanh %43 : vector<1x32xf32>
    %45 = arith.mulf %40, %44 : vector<1x32xf32>
    %c1 = arith.constant 1 : index
    %c0_15 = arith.constant 0 : index
    %46 = vector.load %arg8[%c1, %c0_15] : memref<8x32xf32, #tpu.memory_space<vmem>>, vector<1x32xf32>
    tpu.vector_store %arg8[%c1, %c0_15], %45 {strides = array<i32>} : memref<8x32xf32, #tpu.memory_space<vmem>>, vector<1x32xf32>,
    %47 = vector.extract_strided_slice %5 {offsets = [2, 0], sizes = [1, 128], strides = [1, 1]} : vector<8x128xf32> to vector<1x128xf32>
    %cst_16 = arith.constant dense<0.000000e+00> : vector<1x128xf32>
    %48 = tpu.matmul %45, %6, %cst_16 {dimension_numbers = #tpu.dot_dimension_numbers<[1], [0], [0], [1], [0, 0, 1, 1], [], []>} : vector<1x32xf32>, vector<32x128xf32>, vector<1x128xf32> -> vector<1x128xf32>
    %49 = arith.addf %47, %48 : vector<1x128xf32>
    %50 = arith.negf %49 : vector<1x128xf32>
    %51 = math.exp %50 : vector<1x128xf32>
    %cst_17 = arith.constant 1.000000e+00 : f32
    %52 = vector.broadcast %cst_17 : f32 to vector<1x128xf32>
    %53 = arith.addf %52, %51 : vector<1x128xf32>
    %54 = arith.divf %52, %53 : vector<1x128xf32>
    %55 = math.tanh %49 : vector<1x128xf32>
    %56 = vector.extract_strided_slice %54 {offsets = [0, 0], sizes = [1, 32], strides = [1, 1]} : vector<1x128xf32> to vector<1x32xf32>
    %57 = vector.extract_strided_slice %54 {offsets = [0, 32], sizes = [1, 32], strides = [1, 1]} : vector<1x128xf32> to vector<1x32xf32>
    %58 = vector.extract_strided_slice %55 {offsets = [0, 64], sizes = [1, 32], strides = [1, 1]} : vector<1x128xf32> to vector<1x32xf32>
    %59 = vector.extract_strided_slice %54 {offsets = [0, 96], sizes = [1, 32], strides = [1, 1]} : vector<1x128xf32> to vector<1x32xf32>
    %60 = arith.mulf %57, %43 : vector<1x32xf32>
    %61 = arith.mulf %56, %58 : vector<1x32xf32>
    %62 = arith.addf %60, %61 : vector<1x32xf32>
    %63 = math.tanh %62 : vector<1x32xf32>
    %64 = arith.mulf %59, %63 : vector<1x32xf32>
    %c2 = arith.constant 2 : index
    %c0_18 = arith.constant 0 : index
    %65 = vector.load %arg8[%c2, %c0_18] : memref<8x32xf32, #tpu.memory_space<vmem>>, vector<1x32xf32>
    tpu.vector_store %arg8[%c2, %c0_18], %64 {strides = array<i32>} : memref<8x32xf32, #tpu.memory_space<vmem>>, vector<1x32xf32>,
    %66 = vector.extract_strided_slice %5 {offsets = [3, 0], sizes = [1, 128], strides = [1, 1]} : vector<8x128xf32> to vector<1x128xf32>
    %cst_19 = arith.constant dense<0.000000e+00> : vector<1x128xf32>
    %67 = tpu.matmul %64, %6, %cst_19 {dimension_numbers = #tpu.dot_dimension_numbers<[1], [0], [0], [1], [0, 0, 1, 1], [], []>} : vector<1x32xf32>, vector<32x128xf32>, vector<1x128xf32> -> vector<1x128xf32>
    %68 = arith.addf %66, %67 : vector<1x128xf32>
    %69 = arith.negf %68 : vector<1x128xf32>
    %70 = math.exp %69 : vector<1x128xf32>
    %cst_20 = arith.constant 1.000000e+00 : f32
    %71 = vector.broadcast %cst_20 : f32 to vector<1x128xf32>
    %72 = arith.addf %71, %70 : vector<1x128xf32>
    %73 = arith.divf %71, %72 : vector<1x128xf32>
    %74 = math.tanh %68 : vector<1x128xf32>
    %75 = vector.extract_strided_slice %73 {offsets = [0, 0], sizes = [1, 32], strides = [1, 1]} : vector<1x128xf32> to vector<1x32xf32>
    %76 = vector.extract_strided_slice %73 {offsets = [0, 32], sizes = [1, 32], strides = [1, 1]} : vector<1x128xf32> to vector<1x32xf32>
    %77 = vector.extract_strided_slice %74 {offsets = [0, 64], sizes = [1, 32], strides = [1, 1]} : vector<1x128xf32> to vector<1x32xf32>
    %78 = vector.extract_strided_slice %73 {offsets = [0, 96], sizes = [1, 32], strides = [1, 1]} : vector<1x128xf32> to vector<1x32xf32>
    %79 = arith.mulf %76, %62 : vector<1x32xf32>
    %80 = arith.mulf %75, %77 : vector<1x32xf32>
    %81 = arith.addf %79, %80 : vector<1x32xf32>
    %82 = math.tanh %81 : vector<1x32xf32>
    %83 = arith.mulf %78, %82 : vector<1x32xf32>
    %c3 = arith.constant 3 : index
    %c0_21 = arith.constant 0 : index
    %84 = vector.load %arg8[%c3, %c0_21] : memref<8x32xf32, #tpu.memory_space<vmem>>, vector<1x32xf32>
    tpu.vector_store %arg8[%c3, %c0_21], %83 {strides = array<i32>} : memref<8x32xf32, #tpu.memory_space<vmem>>, vector<1x32xf32>,
    %85 = vector.extract_strided_slice %5 {offsets = [4, 0], sizes = [1, 128], strides = [1, 1]} : vector<8x128xf32> to vector<1x128xf32>
    %cst_22 = arith.constant dense<0.000000e+00> : vector<1x128xf32>
    %86 = tpu.matmul %83, %6, %cst_22 {dimension_numbers = #tpu.dot_dimension_numbers<[1], [0], [0], [1], [0, 0, 1, 1], [], []>} : vector<1x32xf32>, vector<32x128xf32>, vector<1x128xf32> -> vector<1x128xf32>
    %87 = arith.addf %85, %86 : vector<1x128xf32>
    %88 = arith.negf %87 : vector<1x128xf32>
    %89 = math.exp %88 : vector<1x128xf32>
    %cst_23 = arith.constant 1.000000e+00 : f32
    %90 = vector.broadcast %cst_23 : f32 to vector<1x128xf32>
    %91 = arith.addf %90, %89 : vector<1x128xf32>
    %92 = arith.divf %90, %91 : vector<1x128xf32>
    %93 = math.tanh %87 : vector<1x128xf32>
    %94 = vector.extract_strided_slice %92 {offsets = [0, 0], sizes = [1, 32], strides = [1, 1]} : vector<1x128xf32> to vector<1x32xf32>
    %95 = vector.extract_strided_slice %92 {offsets = [0, 32], sizes = [1, 32], strides = [1, 1]} : vector<1x128xf32> to vector<1x32xf32>
    %96 = vector.extract_strided_slice %93 {offsets = [0, 64], sizes = [1, 32], strides = [1, 1]} : vector<1x128xf32> to vector<1x32xf32>
    %97 = vector.extract_strided_slice %92 {offsets = [0, 96], sizes = [1, 32], strides = [1, 1]} : vector<1x128xf32> to vector<1x32xf32>
    %98 = arith.mulf %95, %81 : vector<1x32xf32>
    %99 = arith.mulf %94, %96 : vector<1x32xf32>
    %100 = arith.addf %98, %99 : vector<1x32xf32>
    %101 = math.tanh %100 : vector<1x32xf32>
    %102 = arith.mulf %97, %101 : vector<1x32xf32>
    %c4 = arith.constant 4 : index
    %c0_24 = arith.constant 0 : index
    %103 = vector.load %arg8[%c4, %c0_24] : memref<8x32xf32, #tpu.memory_space<vmem>>, vector<1x32xf32>
    tpu.vector_store %arg8[%c4, %c0_24], %102 {strides = array<i32>} : memref<8x32xf32, #tpu.memory_space<vmem>>, vector<1x32xf32>,
    %104 = vector.extract_strided_slice %5 {offsets = [5, 0], sizes = [1, 128], strides = [1, 1]} : vector<8x128xf32> to vector<1x128xf32>
    %cst_25 = arith.constant dense<0.000000e+00> : vector<1x128xf32>
    %105 = tpu.matmul %102, %6, %cst_25 {dimension_numbers = #tpu.dot_dimension_numbers<[1], [0], [0], [1], [0, 0, 1, 1], [], []>} : vector<1x32xf32>, vector<32x128xf32>, vector<1x128xf32> -> vector<1x128xf32>
    %106 = arith.addf %104, %105 : vector<1x128xf32>
    %107 = arith.negf %106 : vector<1x128xf32>
    %108 = math.exp %107 : vector<1x128xf32>
    %cst_26 = arith.constant 1.000000e+00 : f32
    %109 = vector.broadcast %cst_26 : f32 to vector<1x128xf32>
    %110 = arith.addf %109, %108 : vector<1x128xf32>
    %111 = arith.divf %109, %110 : vector<1x128xf32>
    %112 = math.tanh %106 : vector<1x128xf32>
    %113 = vector.extract_strided_slice %111 {offsets = [0, 0], sizes = [1, 32], strides = [1, 1]} : vector<1x128xf32> to vector<1x32xf32>
    %114 = vector.extract_strided_slice %111 {offsets = [0, 32], sizes = [1, 32], strides = [1, 1]} : vector<1x128xf32> to vector<1x32xf32>
    %115 = vector.extract_strided_slice %112 {offsets = [0, 64], sizes = [1, 32], strides = [1, 1]} : vector<1x128xf32> to vector<1x32xf32>
    %116 = vector.extract_strided_slice %111 {offsets = [0, 96], sizes = [1, 32], strides = [1, 1]} : vector<1x128xf32> to vector<1x32xf32>
    %117 = arith.mulf %114, %100 : vector<1x32xf32>
    %118 = arith.mulf %113, %115 : vector<1x32xf32>
    %119 = arith.addf %117, %118 : vector<1x32xf32>
    %120 = math.tanh %119 : vector<1x32xf32>
    %121 = arith.mulf %116, %120 : vector<1x32xf32>
    %c5 = arith.constant 5 : index
    %c0_27 = arith.constant 0 : index
    %122 = vector.load %arg8[%c5, %c0_27] : memref<8x32xf32, #tpu.memory_space<vmem>>, vector<1x32xf32>
    tpu.vector_store %arg8[%c5, %c0_27], %121 {strides = array<i32>} : memref<8x32xf32, #tpu.memory_space<vmem>>, vector<1x32xf32>,
    %123 = vector.extract_strided_slice %5 {offsets = [6, 0], sizes = [1, 128], strides = [1, 1]} : vector<8x128xf32> to vector<1x128xf32>
    %cst_28 = arith.constant dense<0.000000e+00> : vector<1x128xf32>
    %124 = tpu.matmul %121, %6, %cst_28 {dimension_numbers = #tpu.dot_dimension_numbers<[1], [0], [0], [1], [0, 0, 1, 1], [], []>} : vector<1x32xf32>, vector<32x128xf32>, vector<1x128xf32> -> vector<1x128xf32>
    %125 = arith.addf %123, %124 : vector<1x128xf32>
    %126 = arith.negf %125 : vector<1x128xf32>
    %127 = math.exp %126 : vector<1x128xf32>
    %cst_29 = arith.constant 1.000000e+00 : f32
    %128 = vector.broadcast %cst_29 : f32 to vector<1x128xf32>
    %129 = arith.addf %128, %127 : vector<1x128xf32>
    %130 = arith.divf %128, %129 : vector<1x128xf32>
    %131 = math.tanh %125 : vector<1x128xf32>
    %132 = vector.extract_strided_slice %130 {offsets = [0, 0], sizes = [1, 32], strides = [1, 1]} : vector<1x128xf32> to vector<1x32xf32>
    %133 = vector.extract_strided_slice %130 {offsets = [0, 32], sizes = [1, 32], strides = [1, 1]} : vector<1x128xf32> to vector<1x32xf32>
    %134 = vector.extract_strided_slice %131 {offsets = [0, 64], sizes = [1, 32], strides = [1, 1]} : vector<1x128xf32> to vector<1x32xf32>
    %135 = vector.extract_strided_slice %130 {offsets = [0, 96], sizes = [1, 32], strides = [1, 1]} : vector<1x128xf32> to vector<1x32xf32>
    %136 = arith.mulf %133, %119 : vector<1x32xf32>
    %137 = arith.mulf %132, %134 : vector<1x32xf32>
    %138 = arith.addf %136, %137 : vector<1x32xf32>
    %139 = math.tanh %138 : vector<1x32xf32>
    %140 = arith.mulf %135, %139 : vector<1x32xf32>
    %c6 = arith.constant 6 : index
    %c0_30 = arith.constant 0 : index
    %141 = vector.load %arg8[%c6, %c0_30] : memref<8x32xf32, #tpu.memory_space<vmem>>, vector<1x32xf32>
    tpu.vector_store %arg8[%c6, %c0_30], %140 {strides = array<i32>} : memref<8x32xf32, #tpu.memory_space<vmem>>, vector<1x32xf32>,
    %142 = vector.extract_strided_slice %5 {offsets = [7, 0], sizes = [1, 128], strides = [1, 1]} : vector<8x128xf32> to vector<1x128xf32>
    %cst_31 = arith.constant dense<0.000000e+00> : vector<1x128xf32>
    %143 = tpu.matmul %140, %6, %cst_31 {dimension_numbers = #tpu.dot_dimension_numbers<[1], [0], [0], [1], [0, 0, 1, 1], [], []>} : vector<1x32xf32>, vector<32x128xf32>, vector<1x128xf32> -> vector<1x128xf32>
    %144 = arith.addf %142, %143 : vector<1x128xf32>
    %145 = arith.negf %144 : vector<1x128xf32>
    %146 = math.exp %145 : vector<1x128xf32>
    %cst_32 = arith.constant 1.000000e+00 : f32
    %147 = vector.broadcast %cst_32 : f32 to vector<1x128xf32>
    %148 = arith.addf %147, %146 : vector<1x128xf32>
    %149 = arith.divf %147, %148 : vector<1x128xf32>
    %150 = math.tanh %144 : vector<1x128xf32>
    %151 = vector.extract_strided_slice %149 {offsets = [0, 0], sizes = [1, 32], strides = [1, 1]} : vector<1x128xf32> to vector<1x32xf32>
    %152 = vector.extract_strided_slice %149 {offsets = [0, 32], sizes = [1, 32], strides = [1, 1]} : vector<1x128xf32> to vector<1x32xf32>
    %153 = vector.extract_strided_slice %150 {offsets = [0, 64], sizes = [1, 32], strides = [1, 1]} : vector<1x128xf32> to vector<1x32xf32>
    %154 = vector.extract_strided_slice %149 {offsets = [0, 96], sizes = [1, 32], strides = [1, 1]} : vector<1x128xf32> to vector<1x32xf32>
    %155 = arith.mulf %152, %138 : vector<1x32xf32>
    %156 = arith.mulf %151, %153 : vector<1x32xf32>
    %157 = arith.addf %155, %156 : vector<1x32xf32>
    %158 = math.tanh %157 : vector<1x32xf32>
    %159 = arith.mulf %154, %158 : vector<1x32xf32>
    %c7 = arith.constant 7 : index
    %c0_33 = arith.constant 0 : index
    %160 = vector.load %arg8[%c7, %c0_33] : memref<8x32xf32, #tpu.memory_space<vmem>>, vector<1x32xf32>
    tpu.vector_store %arg8[%c7, %c0_33], %159 {strides = array<i32>} : memref<8x32xf32, #tpu.memory_space<vmem>>, vector<1x32xf32>,
    %c0_34 = arith.constant 0 : index
    %c0_35 = arith.constant 0 : index
    %161 = vector.load %arg8[%c0_34, %c0_35] : memref<8x32xf32, #tpu.memory_space<vmem>>, vector<8x32xf32>
    %c0_36 = arith.constant 0 : index
    %c0_37 = arith.constant 0 : index
    %162 = vector.load %arg5[%c0_36, %c0_37] : memref<32x8xf32, #tpu.memory_space<vmem>>, vector<32x8xf32>
    %cst_38 = arith.constant dense<0.000000e+00> : vector<8x8xf32>
    %163 = tpu.matmul %161, %162, %cst_38 {dimension_numbers = #tpu.dot_dimension_numbers<[1], [0], [0], [1], [0, 0, 1, 1], [], []>} : vector<8x32xf32>, vector<32x8xf32>, vector<8x8xf32> -> vector<8x8xf32>
    %c0_39 = arith.constant 0 : index
    %c0_40 = arith.constant 0 : index
    %164 = vector.load %arg6[%c0_39, %c0_40] : memref<1x8xf32, #tpu.memory_space<vmem>>, vector<1x8xf32>
    %165 = vector.broadcast %164 : vector<1x8xf32> to vector<8x8xf32>
    %166 = arith.addf %163, %165 : vector<8x8xf32>
    %c0_41 = arith.constant 0 : index
    %c0_42 = arith.constant 0 : index
    %167 = vector.load %arg7[%c0_41, %c0_42] : memref<8x8xf32, #tpu.memory_space<vmem>>, vector<8x8xf32>
    tpu.vector_store %arg7[%c0_41, %c0_42], %166 {strides = array<i32>} : memref<8x8xf32, #tpu.memory_space<vmem>>, vector<8x8xf32>,
    return
  }
  func.func @transform_0(%arg0: i32) -> (i32, i32) {
    %c0_i32 = arith.constant 0 : i32
    %c0_i32_0 = arith.constant 0 : i32
    %c0_i32_1 = arith.constant 0 : i32
    return %c0_i32, %c0_i32_0 : i32, i32
  }
  func.func @transform_1(%arg0: i32) -> (i32, i32) {
    %c0_i32 = arith.constant 0 : i32
    %c0_i32_0 = arith.constant 0 : i32
    %c0_i32_1 = arith.constant 0 : i32
    return %c0_i32, %c0_i32_0 : i32, i32
  }
  func.func @transform_2(%arg0: i32) -> (i32, i32) {
    %c0_i32 = arith.constant 0 : i32
    %c0_i32_0 = arith.constant 0 : i32
    %c0_i32_1 = arith.constant 0 : i32
    return %c0_i32, %c0_i32_0 : i32, i32
  }
  func.func @transform_3(%arg0: i32) -> (i32, i32) {
    %c0_i32 = arith.constant 0 : i32
    %c0_i32_0 = arith.constant 0 : i32
    %c0_i32_1 = arith.constant 0 : i32
    return %c0_i32, %c0_i32_0 : i32, i32
  }
  func.func @transform_4(%arg0: i32) -> (i32, i32) {
    %c0_i32 = arith.constant 0 : i32
    %c0_i32_0 = arith.constant 0 : i32
    %c0_i32_1 = arith.constant 0 : i32
    return %c0_i32, %c0_i32_0 : i32, i32
  }
  func.func @transform_5(%arg0: i32) -> (i32, i32) {
    %c0_i32 = arith.constant 0 : i32
    %c0_i32_0 = arith.constant 0 : i32
    %c0_i32_1 = arith.constant 0 : i32
    return %c0_i32, %c0_i32_0 : i32, i32
  }
  func.func @transform_6(%arg0: i32) -> (i32, i32) {
    %c0_i32 = arith.constant 0 : i32
    %c0_i32_0 = arith.constant 0 : i32
    %c0_i32_1 = arith.constant 0 : i32
    return %c0_i32, %c0_i32_0 : i32, i32
  }
}

</mosaic_0001>

<llo_original>
// kernel: rnn_forward.1
$region0: #{rnn_forward.1}
  #allocation0 [shape = 'u32[]', space=smem, size = 0x4, offset = 0x4, fixed_abs, tag = 'smem constant byte address 0x4 - core index']
  #allocation1 [shape = 'u32[144,128]{1,0:T(1,128)}', space=vmem, size = 0x12000, scoped, tag = 'internal scratch']
  #allocation2 [shape = 'f32[8,32]{1,0:T(8,128)}', space=vmem, size = 0x1000, scoped, tag = 'scratch operand']
  %s0 = inlined_call_operand.hbm [shape: f32[8,16], index: 0, kind: input, shape index: {}]
  %s1 = inlined_call_operand.vmem [shape: f32[16,128], index: 1, kind: input, shape index: {}]
  %s2 = inlined_call_operand.vmem [shape: f32[32,128], index: 2, kind: input, shape index: {}]
  %s3 = inlined_call_operand.vmem [shape: f32[1,128], index: 3, kind: input, shape index: {}]
  %s4 = inlined_call_operand.vmem [shape: f32[32,8], index: 4, kind: input, shape index: {}]
  %s5 = inlined_call_operand.vmem [shape: f32[1,8], index: 5, kind: input, shape index: {}]
  %s6 = inlined_call_operand.hbm [shape: f32[8,8], index: 6, kind: output, shape index: {}]
  %s7 = sld [smem:[#allocation0]]
  $region38: #{rnn_forward.1} parent=0
    _
  %s9 = ssub.s32 1, %s7
  %s10 = scalar_select 0, %s9, %s7
  $region1: #{rnn_forward.1} parent=0
    #allocation3 [shape = 'u8[4096]{0}', space=vmem, size = 0x1000, scoped, tag = 'input window, operand 0, single buffered']
    #allocation4 [shape = 's32[1]{0}', space=sflag, size = 0x4, scoped, tag = 'scoped memory for rnn_forward.1']
    #allocation5 [shape = 's32[1]{0}', space=sflag, size = 0x4, scoped, tag = 'scoped memory for rnn_forward.1']
    #allocation6 [shape = 'u8[4096]{0}', space=vmem, size = 0x1000, scoped, tag = 'output window, operand 0, single buffered']
    %11 = vsyncpa [#allocation4], 0
    %12 = vsyncpa [#allocation5], 0
    // Predicated region
    $region2: #{rnn_forward.1} parent=1 // pred_check
      _
    $region3: #{rnn_forward.1} parent=1 // pred_check_branch
      %14 = sbr.rel (0) target = $region5
    $region4: #{rnn_forward.1} parent=1 // pred_region
      %s16 = ssub.s32 128, 128
      %17 = vsyncadd [#allocation4], %s16
      %s19 = sshll.u32 [#allocation3], 4
      %s20 = int_to_ptr.vmem [resolvable:$true] %s19
      %22 = dma.hbm_to_vmem [thread:$0]  %s0, 128, %s20, [#allocation4]
    $region5: #{rnn_forward.1} parent=1 // pred_fallthru
      _
    // Predicated region
    $region6: #{rnn_forward.1} parent=1 // pred_check
      _
    $region7: #{rnn_forward.1} parent=1 // pred_check_branch
      %24 = sbr.rel (0) target = $region9
    $region8: #{rnn_forward.1} parent=1 // pred_region
      _
    $region9: #{rnn_forward.1} parent=1 // pred_fallthru
      _
    // Predicated region
    $region10: #{rnn_forward.1} parent=1 // pred_check
      _
    $region11: #{rnn_forward.1} parent=1 // pred_check_branch
      %26 = sbr.rel (0) target = $region13
    $region12: #{rnn_forward.1} parent=1 // pred_region
      _
    $region13: #{rnn_forward.1} parent=1 // pred_fallthru
      _
    // Predicated region
    $region14: #{rnn_forward.1} parent=1 // pred_check
      _
    $region15: #{rnn_forward.1} parent=1 // pred_check_branch
      %28 = sbr.rel (0) target = $region17
    $region16: #{rnn_forward.1} parent=1 // pred_region
      _
    $region17: #{rnn_forward.1} parent=1 // pred_fallthru
      _
    // Predicated region
    $region18: #{rnn_forward.1} parent=1 // pred_check
      _
    $region19: #{rnn_forward.1} parent=1 // pred_check_branch
      %30 = sbr.rel (0) target = $region21
    $region20: #{rnn_forward.1} parent=1 // pred_region
      _
    $region21: #{rnn_forward.1} parent=1 // pred_fallthru
      _
    // Predicated region
    $region22: #{rnn_forward.1} parent=1 // pred_check
      _
    $region23: #{rnn_forward.1} parent=1 // pred_check_branch
      %32 = sbr.rel (0) target = $region25
    $region24: #{rnn_forward.1} parent=1 // pred_region
      _
    $region25: #{rnn_forward.1} parent=1 // pred_fallthru
      _
    // Predicated region
    $region26: #{rnn_forward.1} parent=1 // pred_check
      _
    $region27: #{rnn_forward.1} parent=1 // pred_check_branch
      %34 = sbr.rel (0) target = $region29
    $region28: #{rnn_forward.1} parent=1 // pred_region
      %35 = dma.done [#allocation4], 128
    $region29: #{rnn_forward.1} parent=1 // pred_fallthru
      _
    %v36 = vld [vmem:[#allocation3] sm:$0xff]
    %v37 = vld [vmem:[%s1] sm:$0xff]
    %v38 = vld [vmem:[%s1 + $0x8] sm:$0xff]
    %v39 = vld [vmem:[%s3] sm:$0x1]
    %v41 = vlaneseq
    %v42 = vshrl.u32 %v41, 7
    %v43 = vsub.s32 0, %v42
    %v44 = vrot.slane %v39, %v43
    %vm46 = vcmask 130048
    %v48 = vsel %vm46, %v36, 0
    %50 = vmatprep.subr.mxu0 0.0
    %51 = vmatpush1.msra.mxu0 0.0
    %52 = vmatprep.subr.mxu0 0.0
    %53 = vmatpush1.msra.mxu0 0.0
    %54 = vmatprep.subr.mxu0 0.0
    %55 = vmatpush1.msra.mxu0 0.0
    %56 = vmatprep.subr.mxu0 0.0
    %57 = vmatpush1.msra.mxu0 0.0
    %58 = vmatprep.subr.mxu0 0.0
    %59 = vmatpush1.msra.mxu0 0.0
    %60 = vmatprep.subr.mxu0 0.0
    %61 = vmatpush1.msra.mxu0 0.0
    %62 = vmatprep.subr.mxu0 0.0
    %63 = vmatpush1.msra.mxu0 0.0
    %64 = vmatprep.subr.mxu0 0.0
    %65 = vmatpush1.msra.mxu0 0.0
    %66 = vmatprep.subr.mxu0 0.0
    %67 = vmatpush1.msra.mxu0 0.0
    %68 = vmatprep.subr.mxu0 0.0
    %69 = vmatpush1.msra.mxu0 0.0
    %70 = vmatprep.subr.mxu0 0.0
    %71 = vmatpush1.msra.mxu0 0.0
    %72 = vmatprep.subr.mxu0 0.0
    %73 = vmatpush1.msra.mxu0 0.0
    %74 = vmatprep.subr.mxu0 0.0
    %75 = vmatpush1.msra.mxu0 0.0
    %76 = vmatprep.subr.mxu0 0.0
    %77 = vmatpush1.msra.mxu0 0.0
    %78 = vmatprep.subr.mxu0 0.0
    %79 = vmatpush1.msra.mxu0 %v38
    %80 = vmatprep.subr.mxu0 0.0
    %81 = vmatpush1.msra.mxu0 %v37
    %82 = vmatprep.subr.mxu0 0.0
    %83 = vmatpush2.msra.mxu0 0.0
    %84 = vmatprep.subr.mxu0 0.0
    %85 = vmatpush2.msra.mxu0 0.0
    %86 = vmatprep.subr.mxu0 0.0
    %87 = vmatpush2.msra.mxu0 0.0
    %88 = vmatprep.subr.mxu0 0.0
    %89 = vmatpush2.msra.mxu0 0.0
    %90 = vmatprep.subr.mxu0 0.0
    %91 = vmatpush2.msra.mxu0 0.0
    %92 = vmatprep.subr.mxu0 0.0
    %93 = vmatpush2.msra.mxu0 0.0
    %94 = vmatprep.subr.mxu0 0.0
    %95 = vmatpush2.msra.mxu0 0.0
    %96 = vmatprep.subr.mxu0 0.0
    %97 = vmatpush2.msra.mxu0 0.0
    %98 = vmatprep.subr.mxu0 0.0
    %99 = vmatpush2.msra.mxu0 0.0
    %100 = vmatprep.subr.mxu0 0.0
    %101 = vmatpush2.msra.mxu0 0.0
    %102 = vmatprep.subr.mxu0 0.0
    %103 = vmatpush2.msra.mxu0 0.0
    %104 = vmatprep.subr.mxu0 0.0
    %105 = vmatpush2.msra.mxu0 0.0
    %106 = vmatprep.subr.mxu0 0.0
    %107 = vmatpush2.msra.mxu0 0.0
    %108 = vmatprep.subr.mxu0 0.0
    %109 = vmatpush2.msra.mxu0 0.0
    %110 = vmatprep.subr.mxu0 0.0
    %111 = vmatpush2.msra.mxu0 0.0
    %112 = vmatprep.subr.mxu0 0.0
    %113 = vmatpush2.msra.mxu0 0.0
    %114 = vmatprep.mubr.f32.mxu0 0.0
    %115 = vmatmul.mubr.f32.gmra.mxu0 %v48
    %v116 = vpop.f32.mrf.mxu0
    %v117 = vadd.f32 %v44, %v116
    %v118 = vpop.f32.mrf.mxu0
    %119 = vdwg.mxu0
    %v120 = vld [vmem:[%s2] sm:$0xff]
    %v121 = vld [vmem:[%s2 + $0x8] sm:$0xff]
    %v122 = vld [vmem:[%s2 + $0x10] sm:$0xff]
    %v123 = vld [vmem:[%s2 + $0x18] sm:$0xff]
    %vm124 = vcmask 261120
    %v126 = vsel %vm124, 0.0, 0
    %128 = vmatprep.subr.mxu0 0.0
    %129 = vmatpush1.msra.mxu0 0.0
    %130 = vmatprep.subr.mxu0 0.0
    %131 = vmatpush1.msra.mxu0 0.0
    %132 = vmatprep.subr.mxu0 0.0
    %133 = vmatpush1.msra.mxu0 0.0
    %134 = vmatprep.subr.mxu0 0.0
    %135 = vmatpush1.msra.mxu0 0.0
    %136 = vmatprep.subr.mxu0 0.0
    %137 = vmatpush1.msra.mxu0 0.0
    %138 = vmatprep.subr.mxu0 0.0
    %139 = vmatpush1.msra.mxu0 0.0
    %140 = vmatprep.subr.mxu0 0.0
    %141 = vmatpush1.msra.mxu0 0.0
    %142 = vmatprep.subr.mxu0 0.0
    %143 = vmatpush1.msra.mxu0 0.0
    %144 = vmatprep.subr.mxu0 0.0
    %145 = vmatpush1.msra.mxu0 0.0
    %146 = vmatprep.subr.mxu0 0.0
    %147 = vmatpush1.msra.mxu0 0.0
    %148 = vmatprep.subr.mxu0 0.0
    %149 = vmatpush1.msra.mxu0 0.0
    %150 = vmatprep.subr.mxu0 0.0
    %151 = vmatpush1.msra.mxu0 0.0
    %152 = vmatprep.subr.mxu0 0.0
    %153 = vmatpush1.msra.mxu0 %v123
    %154 = vmatprep.subr.mxu0 0.0
    %155 = vmatpush1.msra.mxu0 %v122
    %156 = vmatprep.subr.mxu0 0.0
    %157 = vmatpush1.msra.mxu0 %v121
    %158 = vmatprep.subr.mxu0 0.0
    %159 = vmatpush1.msra.mxu0 %v120
    %160 = vmatprep.subr.mxu0 0.0
    %161 = vmatpush2.msra.mxu0 0.0
    %162 = vmatprep.subr.mxu0 0.0
    %163 = vmatpush2.msra.mxu0 0.0
    %164 = vmatprep.subr.mxu0 0.0
    %165 = vmatpush2.msra.mxu0 0.0
    %166 = vmatprep.subr.mxu0 0.0
    %167 = vmatpush2.msra.mxu0 0.0
    %168 = vmatprep.subr.mxu0 0.0
    %169 = vmatpush2.msra.mxu0 0.0
    %170 = vmatprep.subr.mxu0 0.0
    %171 = vmatpush2.msra.mxu0 0.0
    %172 = vmatprep.subr.mxu0 0.0
    %173 = vmatpush2.msra.mxu0 0.0
    %174 = vmatprep.subr.mxu0 0.0
    %175 = vmatpush2.msra.mxu0 0.0
    %176 = vmatprep.subr.mxu0 0.0
    %177 = vmatpush2.msra.mxu0 0.0
    %178 = vmatprep.subr.mxu0 0.0
    %179 = vmatpush2.msra.mxu0 0.0
    %180 = vmatprep.subr.mxu0 0.0
    %181 = vmatpush2.msra.mxu0 0.0
    %182 = vmatprep.subr.mxu0 0.0
    %183 = vmatpush2.msra.mxu0 0.0
    %184 = vmatprep.subr.mxu0 0.0
    %185 = vmatpush2.msra.mxu0 0.0
    %186 = vmatprep.subr.mxu0 0.0
    %187 = vmatpush2.msra.mxu0 0.0
    %188 = vmatprep.subr.mxu0 0.0
    %189 = vmatpush2.msra.mxu0 0.0
    %190 = vmatprep.subr.mxu0 0.0
    %191 = vmatpush2.msra.mxu0 0.0
    %192 = vmatprep.mubr.f32.mxu0 0.0
    %193 = vmatmul.mubr.f32.gmra.mxu0 %v126
    %v194 = vpop.f32.mrf.mxu0
    %v195 = vadd.f32 0.0, %v194
    %v196 = vpop.f32.mrf.mxu0
    %197 = vdwg.mxu0
    %v198 = vadd.f32 %v117, %v195
    %v199 = vxor.u32 %v198, 2147483648
    %v200 = vmul.f32 %v199, 1.442695
    %v201 = vpow.pop %v200
    %v202 = vadd.f32 %v201, 1.0
    %v203 = vrcp.pop %v202
    %v204 = vmul.f32 1.0, %v203
    %v205 = vtanh.pop %v198
    %v206 = vmul.f32 %v204, 0.0
    %208 = vrot.lane.b32.xlu0 %v205, 64
    %v209 = vpop.permute.xlu0 %208
    %v211 = vmul.f32 %v204, %v209
    %213 = vrot.lane.b32.xlu0 %v211, 32
    %v214 = vpop.permute.xlu0 %213
    %v216 = vadd.f32 %v206, %v214
    %v217 = vtanh.pop %v216
    %219 = vrot.lane.b32.xlu0 %v217, 64
    %v220 = vpop.permute.xlu0 %219
    %v222 = vmul.f32 %v204, %v220
    %224 = vrot.lane.b32.xlu0 %v222, 32
    %v225 = vpop.permute.xlu0 %224
    %vm227 = vcmask 253952
    %228 = vst.msk [vmem:[#allocation2] sm:$0x1] %vm227, %v225
    %v229 = vsel %vm124, %v225, 0
    %231 = vmatprep.subr.mxu0 0.0
    %232 = vmatpush1.msra.mxu0 0.0
    %233 = vmatprep.subr.mxu0 0.0
    %234 = vmatpush1.msra.mxu0 0.0
    %235 = vmatprep.subr.mxu0 0.0
    %236 = vmatpush1.msra.mxu0 0.0
    %237 = vmatprep.subr.mxu0 0.0
    %238 = vmatpush1.msra.mxu0 0.0
    %239 = vmatprep.subr.mxu0 0.0
    %240 = vmatpush1.msra.mxu0 0.0
    %241 = vmatprep.subr.mxu0 0.0
    %242 = vmatpush1.msra.mxu0 0.0
    %243 = vmatprep.subr.mxu0 0.0
    %244 = vmatpush1.msra.mxu0 0.0
    %245 = vmatprep.subr.mxu0 0.0
    %246 = vmatpush1.msra.mxu0 0.0
    %247 = vmatprep.subr.mxu0 0.0
    %248 = vmatpush1.msra.mxu0 0.0
    %249 = vmatprep.subr.mxu0 0.0
    %250 = vmatpush1.msra.mxu0 0.0
    %251 = vmatprep.subr.mxu0 0.0
    %252 = vmatpush1.msra.mxu0 0.0
    %253 = vmatprep.subr.mxu0 0.0
    %254 = vmatpush1.msra.mxu0 0.0
    %255 = vmatprep.subr.mxu0 0.0
    %256 = vmatpush1.msra.mxu0 %v123
    %257 = vmatprep.subr.mxu0 0.0
    %258 = vmatpush1.msra.mxu0 %v122
    %259 = vmatprep.subr.mxu0 0.0
    %260 = vmatpush1.msra.mxu0 %v121
    %261 = vmatprep.subr.mxu0 0.0
    %262 = vmatpush1.msra.mxu0 %v120
    %263 = vmatprep.subr.mxu0 0.0
    %264 = vmatpush2.msra.mxu0 0.0
    %265 = vmatprep.subr.mxu0 0.0
    %266 = vmatpush2.msra.mxu0 0.0
    %267 = vmatprep.subr.mxu0 0.0
    %268 = vmatpush2.msra.mxu0 0.0
    %269 = vmatprep.subr.mxu0 0.0
    %270 = vmatpush2.msra.mxu0 0.0
    %271 = vmatprep.subr.mxu0 0.0
    %272 = vmatpush2.msra.mxu0 0.0
    %273 = vmatprep.subr.mxu0 0.0
    %274 = vmatpush2.msra.mxu0 0.0
    %275 = vmatprep.subr.mxu0 0.0
    %276 = vmatpush2.msra.mxu0 0.0
    %277 = vmatprep.subr.mxu0 0.0
    %278 = vmatpush2.msra.mxu0 0.0
    %279 = vmatprep.subr.mxu0 0.0
    %280 = vmatpush2.msra.mxu0 0.0
    %281 = vmatprep.subr.mxu0 0.0
    %282 = vmatpush2.msra.mxu0 0.0
    %283 = vmatprep.subr.mxu0 0.0
    %284 = vmatpush2.msra.mxu0 0.0
    %285 = vmatprep.subr.mxu0 0.0
    %286 = vmatpush2.msra.mxu0 0.0
    %287 = vmatprep.subr.mxu0 0.0
    %288 = vmatpush2.msra.mxu0 0.0
    %289 = vmatprep.subr.mxu0 0.0
    %290 = vmatpush2.msra.mxu0 0.0
    %291 = vmatprep.subr.mxu0 0.0
    %292 = vmatpush2.msra.mxu0 0.0
    %293 = vmatprep.subr.mxu0 0.0
    %294 = vmatpush2.msra.mxu0 0.0
    %295 = vmatprep.mubr.f32.mxu0 0.0
    %296 = vmatmul.mubr.f32.gmra.mxu0 %v229
    %v297 = vpop.f32.mrf.mxu0
    %v298 = vadd.f32 0.0, %v297
    %v299 = vpop.f32.mrf.mxu0
    %300 = vdwg.mxu0
    %v302 = vrot.slane %v298, 7
    %v304 = vadd.f32 %v117, %v302
    %v305 = vxor.u32 %v304, 2147483648
    %v306 = vmul.f32 %v305, 1.442695
    %v307 = vpow.pop %v306
    %v308 = vadd.f32 %v307, 1.0
    %v309 = vrcp.pop %v308
    %v310 = vmul.f32 1.0, %v309
    %v311 = vtanh.pop %v304
    %v313 = vrot.slane %v216, 7
    %v315 = vmul.f32 %v310, %v313
    %317 = vrot.lane.b32.xlu0 %v311, 64
    %v318 = vpop.permute.xlu0 %317
    %v320 = vmul.f32 %v310, %v318
    %322 = vrot.lane.b32.xlu0 %v320, 32
    %v323 = vpop.permute.xlu0 %322
    %v325 = vadd.f32 %v315, %v323
    %v326 = vtanh.pop %v325
    %328 = vrot.lane.b32.xlu0 %v326, 64
    %v329 = vpop.permute.xlu0 %328
    %v331 = vmul.f32 %v310, %v329
    %333 = vrot.lane.b32.xlu0 %v331, 32
    %v334 = vpop.permute.xlu0 %333
    %vm336 = vcmask 254977
    %337 = vst.msk [vmem:[#allocation2] sm:$0x2] %vm336, %v334
    %v338 = vrot.slane %v331, 1
    %339 = vrot.lane.b32.xlu0 %v338, 32
    %v340 = vpop.permute.xlu0 %339
    %v341 = vsel %vm124, %v340, 0
    %343 = vmatprep.subr.mxu0 0.0
    %344 = vmatpush1.msra.mxu0 0.0
    %345 = vmatprep.subr.mxu0 0.0
    %346 = vmatpush1.msra.mxu0 0.0
    %347 = vmatprep.subr.mxu0 0.0
    %348 = vmatpush1.msra.mxu0 0.0
    %349 = vmatprep.subr.mxu0 0.0
    %350 = vmatpush1.msra.mxu0 0.0
    %351 = vmatprep.subr.mxu0 0.0
    %352 = vmatpush1.msra.mxu0 0.0
    %353 = vmatprep.subr.mxu0 0.0
    %354 = vmatpush1.msra.mxu0 0.0
    %355 = vmatprep.subr.mxu0 0.0
    %356 = vmatpush1.msra.mxu0 0.0
    %357 = vmatprep.subr.mxu0 0.0
    %358 = vmatpush1.msra.mxu0 0.0
    %359 = vmatprep.subr.mxu0 0.0
    %360 = vmatpush1.msra.mxu0 0.0
    %361 = vmatprep.subr.mxu0 0.0
    %362 = vmatpush1.msra.mxu0 0.0
    %363 = vmatprep.subr.mxu0 0.0
    %364 = vmatpush1.msra.mxu0 0.0
    %365 = vmatprep.subr.mxu0 0.0
    %366 = vmatpush1.msra.mxu0 0.0
    %367 = vmatprep.subr.mxu0 0.0
    %368 = vmatpush1.msra.mxu0 %v123
    %369 = vmatprep.subr.mxu0 0.0
    %370 = vmatpush1.msra.mxu0 %v122
    %371 = vmatprep.subr.mxu0 0.0
    %372 = vmatpush1.msra.mxu0 %v121
    %373 = vmatprep.subr.mxu0 0.0
    %374 = vmatpush1.msra.mxu0 %v120
    %375 = vmatprep.subr.mxu0 0.0
    %376 = vmatpush2.msra.mxu0 0.0
    %377 = vmatprep.subr.mxu0 0.0
    %378 = vmatpush2.msra.mxu0 0.0
    %379 = vmatprep.subr.mxu0 0.0
    %380 = vmatpush2.msra.mxu0 0.0
    %381 = vmatprep.subr.mxu0 0.0
    %382 = vmatpush2.msra.mxu0 0.0
    %383 = vmatprep.subr.mxu0 0.0
    %384 = vmatpush2.msra.mxu0 0.0
    %385 = vmatprep.subr.mxu0 0.0
    %386 = vmatpush2.msra.mxu0 0.0
    %387 = vmatprep.subr.mxu0 0.0
    %388 = vmatpush2.msra.mxu0 0.0
    %389 = vmatprep.subr.mxu0 0.0
    %390 = vmatpush2.msra.mxu0 0.0
    %391 = vmatprep.subr.mxu0 0.0
    %392 = vmatpush2.msra.mxu0 0.0
    %393 = vmatprep.subr.mxu0 0.0
    %394 = vmatpush2.msra.mxu0 0.0
    %395 = vmatprep.subr.mxu0 0.0
    %396 = vmatpush2.msra.mxu0 0.0
    %397 = vmatprep.subr.mxu0 0.0
    %398 = vmatpush2.msra.mxu0 0.0
    %399 = vmatprep.subr.mxu0 0.0
    %400 = vmatpush2.msra.mxu0 0.0
    %401 = vmatprep.subr.mxu0 0.0
    %402 = vmatpush2.msra.mxu0 0.0
    %403 = vmatprep.subr.mxu0 0.0
    %404 = vmatpush2.msra.mxu0 0.0
    %405 = vmatprep.subr.mxu0 0.0
    %406 = vmatpush2.msra.mxu0 0.0
    %407 = vmatprep.mubr.f32.mxu0 0.0
    %408 = vmatmul.mubr.f32.gmra.mxu0 %v341
    %v409 = vpop.f32.mrf.mxu0
    %v410 = vadd.f32 0.0, %v409
    %v411 = vpop.f32.mrf.mxu0
    %412 = vdwg.mxu0
    %v414 = vrot.slane %v410, 6
    %v416 = vadd.f32 %v117, %v414
    %v417 = vxor.u32 %v416, 2147483648
    %v418 = vmul.f32 %v417, 1.442695
    %v419 = vpow.pop %v418
    %v420 = vadd.f32 %v419, 1.0
    %v421 = vrcp.pop %v420
    %v422 = vmul.f32 1.0, %v421
    %v423 = vtanh.pop %v416
    %v425 = vrot.slane %v325, 7
    %v427 = vmul.f32 %v422, %v425
    %429 = vrot.lane.b32.xlu0 %v423, 64
    %v430 = vpop.permute.xlu0 %429
    %v432 = vmul.f32 %v422, %v430
    %434 = vrot.lane.b32.xlu0 %v432, 32
    %v435 = vpop.permute.xlu0 %434
    %v437 = vadd.f32 %v427, %v435
    %v438 = vtanh.pop %v437
    %440 = vrot.lane.b32.xlu0 %v438, 64
    %v441 = vpop.permute.xlu0 %440
    %v443 = vmul.f32 %v422, %v441
    %445 = vrot.lane.b32.xlu0 %v443, 32
    %v446 = vpop.permute.xlu0 %445
    %vm448 = vcmask 256002
    %449 = vst.msk [vmem:[#allocation2] sm:$0x4] %vm448, %v446
    %v450 = vrot.slane %v443, 2
    %451 = vrot.lane.b32.xlu0 %v450, 32
    %v452 = vpop.permute.xlu0 %451
    %v453 = vsel %vm124, %v452, 0
    %455 = vmatprep.subr.mxu0 0.0
    %456 = vmatpush1.msra.mxu0 0.0
    %457 = vmatprep.subr.mxu0 0.0
    %458 = vmatpush1.msra.mxu0 0.0
    %459 = vmatprep.subr.mxu0 0.0
    %460 = vmatpush1.msra.mxu0 0.0
    %461 = vmatprep.subr.mxu0 0.0
    %462 = vmatpush1.msra.mxu0 0.0
    %463 = vmatprep.subr.mxu0 0.0
    %464 = vmatpush1.msra.mxu0 0.0
    %465 = vmatprep.subr.mxu0 0.0
    %466 = vmatpush1.msra.mxu0 0.0
    %467 = vmatprep.subr.mxu0 0.0
    %468 = vmatpush1.msra.mxu0 0.0
    %469 = vmatprep.subr.mxu0 0.0
    %470 = vmatpush1.msra.mxu0 0.0
    %471 = vmatprep.subr.mxu0 0.0
    %472 = vmatpush1.msra.mxu0 0.0
    %473 = vmatprep.subr.mxu0 0.0
    %474 = vmatpush1.msra.mxu0 0.0
    %475 = vmatprep.subr.mxu0 0.0
    %476 = vmatpush1.msra.mxu0 0.0
    %477 = vmatprep.subr.mxu0 0.0
    %478 = vmatpush1.msra.mxu0 0.0
    %479 = vmatprep.subr.mxu0 0.0
    %480 = vmatpush1.msra.mxu0 %v123
    %481 = vmatprep.subr.mxu0 0.0
    %482 = vmatpush1.msra.mxu0 %v122
    %483 = vmatprep.subr.mxu0 0.0
    %484 = vmatpush1.msra.mxu0 %v121
    %485 = vmatprep.subr.mxu0 0.0
    %486 = vmatpush1.msra.mxu0 %v120
    %487 = vmatprep.subr.mxu0 0.0
    %488 = vmatpush2.msra.mxu0 0.0
    %489 = vmatprep.subr.mxu0 0.0
    %490 = vmatpush2.msra.mxu0 0.0
    %491 = vmatprep.subr.mxu0 0.0
    %492 = vmatpush2.msra.mxu0 0.0
    %493 = vmatprep.subr.mxu0 0.0
    %494 = vmatpush2.msra.mxu0 0.0
    %495 = vmatprep.subr.mxu0 0.0
    %496 = vmatpush2.msra.mxu0 0.0
    %497 = vmatprep.subr.mxu0 0.0
    %498 = vmatpush2.msra.mxu0 0.0
    %499 = vmatprep.subr.mxu0 0.0
    %500 = vmatpush2.msra.mxu0 0.0
    %501 = vmatprep.subr.mxu0 0.0
    %502 = vmatpush2.msra.mxu0 0.0
    %503 = vmatprep.subr.mxu0 0.0
    %504 = vmatpush2.msra.mxu0 0.0
    %505 = vmatprep.subr.mxu0 0.0
    %506 = vmatpush2.msra.mxu0 0.0
    %507 = vmatprep.subr.mxu0 0.0
    %508 = vmatpush2.msra.mxu0 0.0
    %509 = vmatprep.subr.mxu0 0.0
    %510 = vmatpush2.msra.mxu0 0.0
    %511 = vmatprep.subr.mxu0 0.0
    %512 = vmatpush2.msra.mxu0 0.0
    %513 = vmatprep.subr.mxu0 0.0
    %514 = vmatpush2.msra.mxu0 0.0
    %515 = vmatprep.subr.mxu0 0.0
    %516 = vmatpush2.msra.mxu0 0.0
    %517 = vmatprep.subr.mxu0 0.0
    %518 = vmatpush2.msra.mxu0 0.0
    %519 = vmatprep.mubr.f32.mxu0 0.0
    %520 = vmatmul.mubr.f32.gmra.mxu0 %v453
    %v521 = vpop.f32.mrf.mxu0
    %v522 = vadd.f32 0.0, %v521
    %v523 = vpop.f32.mrf.mxu0
    %524 = vdwg.mxu0
    %v526 = vrot.slane %v522, 5
    %v528 = vadd.f32 %v117, %v526
    %v529 = vxor.u32 %v528, 2147483648
    %v530 = vmul.f32 %v529, 1.442695
    %v531 = vpow.pop %v530
    %v532 = vadd.f32 %v531, 1.0
    %v533 = vrcp.pop %v532
    %v534 = vmul.f32 1.0, %v533
    %v535 = vtanh.pop %v528
    %v537 = vrot.slane %v437, 7
    %v539 = vmul.f32 %v534, %v537
    %541 = vrot.lane.b32.xlu0 %v535, 64
    %v542 = vpop.permute.xlu0 %541
    %v544 = vmul.f32 %v534, %v542
    %546 = vrot.lane.b32.xlu0 %v544, 32
    %v547 = vpop.permute.xlu0 %546
    %v549 = vadd.f32 %v539, %v547
    %v550 = vtanh.pop %v549
    %552 = vrot.lane.b32.xlu0 %v550, 64
    %v553 = vpop.permute.xlu0 %552
    %v555 = vmul.f32 %v534, %v553
    %557 = vrot.lane.b32.xlu0 %v555, 32
    %v558 = vpop.permute.xlu0 %557
    %vm560 = vcmask 257027
    %561 = vst.msk [vmem:[#allocation2] sm:$0x8] %vm560, %v558
    %v562 = vrot.slane %v555, 3
    %563 = vrot.lane.b32.xlu0 %v562, 32
    %v564 = vpop.permute.xlu0 %563
    %v565 = vsel %vm124, %v564, 0
    %567 = vmatprep.subr.mxu0 0.0
    %568 = vmatpush1.msra.mxu0 0.0
    %569 = vmatprep.subr.mxu0 0.0
    %570 = vmatpush1.msra.mxu0 0.0
    %571 = vmatprep.subr.mxu0 0.0
    %572 = vmatpush1.msra.mxu0 0.0
    %573 = vmatprep.subr.mxu0 0.0
    %574 = vmatpush1.msra.mxu0 0.0
    %575 = vmatprep.subr.mxu0 0.0
    %576 = vmatpush1.msra.mxu0 0.0
    %577 = vmatprep.subr.mxu0 0.0
    %578 = vmatpush1.msra.mxu0 0.0
    %579 = vmatprep.subr.mxu0 0.0
    %580 = vmatpush1.msra.mxu0 0.0
    %581 = vmatprep.subr.mxu0 0.0
    %582 = vmatpush1.msra.mxu0 0.0
    %583 = vmatprep.subr.mxu0 0.0
    %584 = vmatpush1.msra.mxu0 0.0
    %585 = vmatprep.subr.mxu0 0.0
    %586 = vmatpush1.msra.mxu0 0.0
    %587 = vmatprep.subr.mxu0 0.0
    %588 = vmatpush1.msra.mxu0 0.0
    %589 = vmatprep.subr.mxu0 0.0
    %590 = vmatpush1.msra.mxu0 0.0
    %591 = vmatprep.subr.mxu0 0.0
    %592 = vmatpush1.msra.mxu0 %v123
    %593 = vmatprep.subr.mxu0 0.0
    %594 = vmatpush1.msra.mxu0 %v122
    %595 = vmatprep.subr.mxu0 0.0
    %596 = vmatpush1.msra.mxu0 %v121
    %597 = vmatprep.subr.mxu0 0.0
    %598 = vmatpush1.msra.mxu0 %v120
    %599 = vmatprep.subr.mxu0 0.0
    %600 = vmatpush2.msra.mxu0 0.0
    %601 = vmatprep.subr.mxu0 0.0
    %602 = vmatpush2.msra.mxu0 0.0
    %603 = vmatprep.subr.mxu0 0.0
    %604 = vmatpush2.msra.mxu0 0.0
    %605 = vmatprep.subr.mxu0 0.0
    %606 = vmatpush2.msra.mxu0 0.0
    %607 = vmatprep.subr.mxu0 0.0
    %608 = vmatpush2.msra.mxu0 0.0
    %609 = vmatprep.subr.mxu0 0.0
    %610 = vmatpush2.msra.mxu0 0.0
    %611 = vmatprep.subr.mxu0 0.0
    %612 = vmatpush2.msra.mxu0 0.0
    %613 = vmatprep.subr.mxu0 0.0
    %614 = vmatpush2.msra.mxu0 0.0
    %615 = vmatprep.subr.mxu0 0.0
    %616 = vmatpush2.msra.mxu0 0.0
    %617 = vmatprep.subr.mxu0 0.0
    %618 = vmatpush2.msra.mxu0 0.0
    %619 = vmatprep.subr.mxu0 0.0
    %620 = vmatpush2.msra.mxu0 0.0
    %621 = vmatprep.subr.mxu0 0.0
    %622 = vmatpush2.msra.mxu0 0.0
    %623 = vmatprep.subr.mxu0 0.0
    %624 = vmatpush2.msra.mxu0 0.0
    %625 = vmatprep.subr.mxu0 0.0
    %626 = vmatpush2.msra.mxu0 0.0
    %627 = vmatprep.subr.mxu0 0.0
    %628 = vmatpush2.msra.mxu0 0.0
    %629 = vmatprep.subr.mxu0 0.0
    %630 = vmatpush2.msra.mxu0 0.0
    %631 = vmatprep.mubr.f32.mxu0 0.0
    %632 = vmatmul.mubr.f32.gmra.mxu0 %v565
    %v633 = vpop.f32.mrf.mxu0
    %v634 = vadd.f32 0.0, %v633
    %v635 = vpop.f32.mrf.mxu0
    %636 = vdwg.mxu0
    %v638 = vrot.slane %v634, 4
    %v640 = vadd.f32 %v117, %v638
    %v641 = vxor.u32 %v640, 2147483648
    %v642 = vmul.f32 %v641, 1.442695
    %v643 = vpow.pop %v642
    %v644 = vadd.f32 %v643, 1.0
    %v645 = vrcp.pop %v644
    %v646 = vmul.f32 1.0, %v645
    %v647 = vtanh.pop %v640
    %v649 = vrot.slane %v549, 7
    %v651 = vmul.f32 %v646, %v649
    %653 = vrot.lane.b32.xlu0 %v647, 64
    %v654 = vpop.permute.xlu0 %653
    %v656 = vmul.f32 %v646, %v654
    %658 = vrot.lane.b32.xlu0 %v656, 32
    %v659 = vpop.permute.xlu0 %658
    %v661 = vadd.f32 %v651, %v659
    %v662 = vtanh.pop %v661
    %664 = vrot.lane.b32.xlu0 %v662, 64
    %v665 = vpop.permute.xlu0 %664
    %v667 = vmul.f32 %v646, %v665
    %669 = vrot.lane.b32.xlu0 %v667, 32
    %v670 = vpop.permute.xlu0 %669
    %vm672 = vcmask 258052
    %673 = vst.msk [vmem:[#allocation2] sm:$0x10] %vm672, %v670
    %v674 = vrot.slane %v667, 4
    %675 = vrot.lane.b32.xlu0 %v674, 32
    %v676 = vpop.permute.xlu0 %675
    %v677 = vsel %vm124, %v676, 0
    %679 = vmatprep.subr.mxu0 0.0
    %680 = vmatpush1.msra.mxu0 0.0
    %681 = vmatprep.subr.mxu0 0.0
    %682 = vmatpush1.msra.mxu0 0.0
    %683 = vmatprep.subr.mxu0 0.0
    %684 = vmatpush1.msra.mxu0 0.0
    %685 = vmatprep.subr.mxu0 0.0
    %686 = vmatpush1.msra.mxu0 0.0
    %687 = vmatprep.subr.mxu0 0.0
    %688 = vmatpush1.msra.mxu0 0.0
    %689 = vmatprep.subr.mxu0 0.0
    %690 = vmatpush1.msra.mxu0 0.0
    %691 = vmatprep.subr.mxu0 0.0
    %692 = vmatpush1.msra.mxu0 0.0
    %693 = vmatprep.subr.mxu0 0.0
    %694 = vmatpush1.msra.mxu0 0.0
    %695 = vmatprep.subr.mxu0 0.0
    %696 = vmatpush1.msra.mxu0 0.0
    %697 = vmatprep.subr.mxu0 0.0
    %698 = vmatpush1.msra.mxu0 0.0
    %699 = vmatprep.subr.mxu0 0.0
    %700 = vmatpush1.msra.mxu0 0.0
    %701 = vmatprep.subr.mxu0 0.0
    %702 = vmatpush1.msra.mxu0 0.0
    %703 = vmatprep.subr.mxu0 0.0
    %704 = vmatpush1.msra.mxu0 %v123
    %705 = vmatprep.subr.mxu0 0.0
    %706 = vmatpush1.msra.mxu0 %v122
    %707 = vmatprep.subr.mxu0 0.0
    %708 = vmatpush1.msra.mxu0 %v121
    %709 = vmatprep.subr.mxu0 0.0
    %710 = vmatpush1.msra.mxu0 %v120
    %711 = vmatprep.subr.mxu0 0.0
    %712 = vmatpush2.msra.mxu0 0.0
    %713 = vmatprep.subr.mxu0 0.0
    %714 = vmatpush2.msra.mxu0 0.0
    %715 = vmatprep.subr.mxu0 0.0
    %716 = vmatpush2.msra.mxu0 0.0
    %717 = vmatprep.subr.mxu0 0.0
    %718 = vmatpush2.msra.mxu0 0.0
    %719 = vmatprep.subr.mxu0 0.0
    %720 = vmatpush2.msra.mxu0 0.0
    %721 = vmatprep.subr.mxu0 0.0
    %722 = vmatpush2.msra.mxu0 0.0
    %723 = vmatprep.subr.mxu0 0.0
    %724 = vmatpush2.msra.mxu0 0.0
    %725 = vmatprep.subr.mxu0 0.0
    %726 = vmatpush2.msra.mxu0 0.0
    %727 = vmatprep.subr.mxu0 0.0
    %728 = vmatpush2.msra.mxu0 0.0
    %729 = vmatprep.subr.mxu0 0.0
    %730 = vmatpush2.msra.mxu0 0.0
    %731 = vmatprep.subr.mxu0 0.0
    %732 = vmatpush2.msra.mxu0 0.0
    %733 = vmatprep.subr.mxu0 0.0
    %734 = vmatpush2.msra.mxu0 0.0
    %735 = vmatprep.subr.mxu0 0.0
    %736 = vmatpush2.msra.mxu0 0.0
    %737 = vmatprep.subr.mxu0 0.0
    %738 = vmatpush2.msra.mxu0 0.0
    %739 = vmatprep.subr.mxu0 0.0
    %740 = vmatpush2.msra.mxu0 0.0
    %741 = vmatprep.subr.mxu0 0.0
    %742 = vmatpush2.msra.mxu0 0.0
    %743 = vmatprep.mubr.f32.mxu0 0.0
    %744 = vmatmul.mubr.f32.gmra.mxu0 %v677
    %v745 = vpop.f32.mrf.mxu0
    %v746 = vadd.f32 0.0, %v745
    %v747 = vpop.f32.mrf.mxu0
    %748 = vdwg.mxu0
    %v750 = vrot.slane %v746, 3
    %v752 = vadd.f32 %v117, %v750
    %v753 = vxor.u32 %v752, 2147483648
    %v754 = vmul.f32 %v753, 1.442695
    %v755 = vpow.pop %v754
    %v756 = vadd.f32 %v755, 1.0
    %v757 = vrcp.pop %v756
    %v758 = vmul.f32 1.0, %v757
    %v759 = vtanh.pop %v752
    %v761 = vrot.slane %v661, 7
    %v763 = vmul.f32 %v758, %v761
    %765 = vrot.lane.b32.xlu0 %v759, 64
    %v766 = vpop.permute.xlu0 %765
    %v768 = vmul.f32 %v758, %v766
    %770 = vrot.lane.b32.xlu0 %v768, 32
    %v771 = vpop.permute.xlu0 %770
    %v773 = vadd.f32 %v763, %v771
    %v774 = vtanh.pop %v773
    %776 = vrot.lane.b32.xlu0 %v774, 64
    %v777 = vpop.permute.xlu0 %776
    %v779 = vmul.f32 %v758, %v777
    %781 = vrot.lane.b32.xlu0 %v779, 32
    %v782 = vpop.permute.xlu0 %781
    %vm784 = vcmask 259077
    %785 = vst.msk [vmem:[#allocation2] sm:$0x20] %vm784, %v782
    %v786 = vrot.slane %v779, 5
    %787 = vrot.lane.b32.xlu0 %v786, 32
    %v788 = vpop.permute.xlu0 %787
    %v789 = vsel %vm124, %v788, 0
    %791 = vmatprep.subr.mxu0 0.0
    %792 = vmatpush1.msra.mxu0 0.0
    %793 = vmatprep.subr.mxu0 0.0
    %794 = vmatpush1.msra.mxu0 0.0
    %795 = vmatprep.subr.mxu0 0.0
    %796 = vmatpush1.msra.mxu0 0.0
    %797 = vmatprep.subr.mxu0 0.0
    %798 = vmatpush1.msra.mxu0 0.0
    %799 = vmatprep.subr.mxu0 0.0
    %800 = vmatpush1.msra.mxu0 0.0
    %801 = vmatprep.subr.mxu0 0.0
    %802 = vmatpush1.msra.mxu0 0.0
    %803 = vmatprep.subr.mxu0 0.0
    %804 = vmatpush1.msra.mxu0 0.0
    %805 = vmatprep.subr.mxu0 0.0
    %806 = vmatpush1.msra.mxu0 0.0
    %807 = vmatprep.subr.mxu0 0.0
    %808 = vmatpush1.msra.mxu0 0.0
    %809 = vmatprep.subr.mxu0 0.0
    %810 = vmatpush1.msra.mxu0 0.0
    %811 = vmatprep.subr.mxu0 0.0
    %812 = vmatpush1.msra.mxu0 0.0
    %813 = vmatprep.subr.mxu0 0.0
    %814 = vmatpush1.msra.mxu0 0.0
    %815 = vmatprep.subr.mxu0 0.0
    %816 = vmatpush1.msra.mxu0 %v123
    %817 = vmatprep.subr.mxu0 0.0
    %818 = vmatpush1.msra.mxu0 %v122
    %819 = vmatprep.subr.mxu0 0.0
    %820 = vmatpush1.msra.mxu0 %v121
    %821 = vmatprep.subr.mxu0 0.0
    %822 = vmatpush1.msra.mxu0 %v120
    %823 = vmatprep.subr.mxu0 0.0
    %824 = vmatpush2.msra.mxu0 0.0
    %825 = vmatprep.subr.mxu0 0.0
    %826 = vmatpush2.msra.mxu0 0.0
    %827 = vmatprep.subr.mxu0 0.0
    %828 = vmatpush2.msra.mxu0 0.0
    %829 = vmatprep.subr.mxu0 0.0
    %830 = vmatpush2.msra.mxu0 0.0
    %831 = vmatprep.subr.mxu0 0.0
    %832 = vmatpush2.msra.mxu0 0.0
    %833 = vmatprep.subr.mxu0 0.0
    %834 = vmatpush2.msra.mxu0 0.0
    %835 = vmatprep.subr.mxu0 0.0
    %836 = vmatpush2.msra.mxu0 0.0
    %837 = vmatprep.subr.mxu0 0.0
    %838 = vmatpush2.msra.mxu0 0.0
    %839 = vmatprep.subr.mxu0 0.0
    %840 = vmatpush2.msra.mxu0 0.0
    %841 = vmatprep.subr.mxu0 0.0
    %842 = vmatpush2.msra.mxu0 0.0
    %843 = vmatprep.subr.mxu0 0.0
    %844 = vmatpush2.msra.mxu0 0.0
    %845 = vmatprep.subr.mxu0 0.0
    %846 = vmatpush2.msra.mxu0 0.0
    %847 = vmatprep.subr.mxu0 0.0
    %848 = vmatpush2.msra.mxu0 0.0
    %849 = vmatprep.subr.mxu0 0.0
    %850 = vmatpush2.msra.mxu0 0.0
    %851 = vmatprep.subr.mxu0 0.0
    %852 = vmatpush2.msra.mxu0 0.0
    %853 = vmatprep.subr.mxu0 0.0
    %854 = vmatpush2.msra.mxu0 0.0
    %855 = vmatprep.mubr.f32.mxu0 0.0
    %856 = vmatmul.mubr.f32.gmra.mxu0 %v789
    %v857 = vpop.f32.mrf.mxu0
    %v858 = vadd.f32 0.0, %v857
    %v859 = vpop.f32.mrf.mxu0
    %860 = vdwg.mxu0
    %v862 = vrot.slane %v858, 2
    %v864 = vadd.f32 %v117, %v862
    %v865 = vxor.u32 %v864, 2147483648
    %v866 = vmul.f32 %v865, 1.442695
    %v867 = vpow.pop %v866
    %v868 = vadd.f32 %v867, 1.0
    %v869 = vrcp.pop %v868
    %v870 = vmul.f32 1.0, %v869
    %v871 = vtanh.pop %v864
    %v873 = vrot.slane %v773, 7
    %v875 = vmul.f32 %v870, %v873
    %877 = vrot.lane.b32.xlu0 %v871, 64
    %v878 = vpop.permute.xlu0 %877
    %v880 = vmul.f32 %v870, %v878
    %882 = vrot.lane.b32.xlu0 %v880, 32
    %v883 = vpop.permute.xlu0 %882
    %v885 = vadd.f32 %v875, %v883
    %v886 = vtanh.pop %v885
    %888 = vrot.lane.b32.xlu0 %v886, 64
    %v889 = vpop.permute.xlu0 %888
    %v891 = vmul.f32 %v870, %v889
    %893 = vrot.lane.b32.xlu0 %v891, 32
    %v894 = vpop.permute.xlu0 %893
    %vm896 = vcmask 260102
    %897 = vst.msk [vmem:[#allocation2] sm:$0x40] %vm896, %v894
    %v898 = vrot.slane %v891, 6
    %899 = vrot.lane.b32.xlu0 %v898, 32
    %v900 = vpop.permute.xlu0 %899
    %v901 = vsel %vm124, %v900, 0
    %903 = vmatprep.subr.mxu0 0.0
    %904 = vmatpush1.msra.mxu0 0.0
    %905 = vmatprep.subr.mxu0 0.0
    %906 = vmatpush1.msra.mxu0 0.0
    %907 = vmatprep.subr.mxu0 0.0
    %908 = vmatpush1.msra.mxu0 0.0
    %909 = vmatprep.subr.mxu0 0.0
    %910 = vmatpush1.msra.mxu0 0.0
    %911 = vmatprep.subr.mxu0 0.0
    %912 = vmatpush1.msra.mxu0 0.0
    %913 = vmatprep.subr.mxu0 0.0
    %914 = vmatpush1.msra.mxu0 0.0
    %915 = vmatprep.subr.mxu0 0.0
    %916 = vmatpush1.msra.mxu0 0.0
    %917 = vmatprep.subr.mxu0 0.0
    %918 = vmatpush1.msra.mxu0 0.0
    %919 = vmatprep.subr.mxu0 0.0
    %920 = vmatpush1.msra.mxu0 0.0
    %921 = vmatprep.subr.mxu0 0.0
    %922 = vmatpush1.msra.mxu0 0.0
    %923 = vmatprep.subr.mxu0 0.0
    %924 = vmatpush1.msra.mxu0 0.0
    %925 = vmatprep.subr.mxu0 0.0
    %926 = vmatpush1.msra.mxu0 0.0
    %927 = vmatprep.subr.mxu0 0.0
    %928 = vmatpush1.msra.mxu0 %v123
    %929 = vmatprep.subr.mxu0 0.0
    %930 = vmatpush1.msra.mxu0 %v122
    %931 = vmatprep.subr.mxu0 0.0
    %932 = vmatpush1.msra.mxu0 %v121
    %933 = vmatprep.subr.mxu0 0.0
    %934 = vmatpush1.msra.mxu0 %v120
    %935 = vmatprep.subr.mxu0 0.0
    %936 = vmatpush2.msra.mxu0 0.0
    %937 = vmatprep.subr.mxu0 0.0
    %938 = vmatpush2.msra.mxu0 0.0
    %939 = vmatprep.subr.mxu0 0.0
    %940 = vmatpush2.msra.mxu0 0.0
    %941 = vmatprep.subr.mxu0 0.0
    %942 = vmatpush2.msra.mxu0 0.0
    %943 = vmatprep.subr.mxu0 0.0
    %944 = vmatpush2.msra.mxu0 0.0
    %945 = vmatprep.subr.mxu0 0.0
    %946 = vmatpush2.msra.mxu0 0.0
    %947 = vmatprep.subr.mxu0 0.0
    %948 = vmatpush2.msra.mxu0 0.0
    %949 = vmatprep.subr.mxu0 0.0
    %950 = vmatpush2.msra.mxu0 0.0
    %951 = vmatprep.subr.mxu0 0.0
    %952 = vmatpush2.msra.mxu0 0.0
    %953 = vmatprep.subr.mxu0 0.0
    %954 = vmatpush2.msra.mxu0 0.0
    %955 = vmatprep.subr.mxu0 0.0
    %956 = vmatpush2.msra.mxu0 0.0
    %957 = vmatprep.subr.mxu0 0.0
    %958 = vmatpush2.msra.mxu0 0.0
    %959 = vmatprep.subr.mxu0 0.0
    %960 = vmatpush2.msra.mxu0 0.0
    %961 = vmatprep.subr.mxu0 0.0
    %962 = vmatpush2.msra.mxu0 0.0
    %963 = vmatprep.subr.mxu0 0.0
    %964 = vmatpush2.msra.mxu0 0.0
    %965 = vmatprep.subr.mxu0 0.0
    %966 = vmatpush2.msra.mxu0 0.0
    %967 = vmatprep.mubr.f32.mxu0 0.0
    %968 = vmatmul.mubr.f32.gmra.mxu0 %v901
    %v969 = vpop.f32.mrf.mxu0
    %v970 = vadd.f32 0.0, %v969
    %v971 = vpop.f32.mrf.mxu0
    %972 = vdwg.mxu0
    %v974 = vrot.slane %v970, 1
    %v976 = vadd.f32 %v117, %v974
    %v977 = vxor.u32 %v976, 2147483648
    %v978 = vmul.f32 %v977, 1.442695
    %v979 = vpow.pop %v978
    %v980 = vadd.f32 %v979, 1.0
    %v981 = vrcp.pop %v980
    %v982 = vmul.f32 1.0, %v981
    %v983 = vtanh.pop %v976
    %v985 = vrot.slane %v885, 7
    %v987 = vmul.f32 %v982, %v985
    %989 = vrot.lane.b32.xlu0 %v983, 64
    %v990 = vpop.permute.xlu0 %989
    %v992 = vmul.f32 %v982, %v990
    %994 = vrot.lane.b32.xlu0 %v992, 32
    %v995 = vpop.permute.xlu0 %994
    %v997 = vadd.f32 %v987, %v995
    %v998 = vtanh.pop %v997
    %1000 = vrot.lane.b32.xlu0 %v998, 64
    %v1001 = vpop.permute.xlu0 %1000
    %v1003 = vmul.f32 %v982, %v1001
    %1005 = vrot.lane.b32.xlu0 %v1003, 32
    %v1006 = vpop.permute.xlu0 %1005
    %vm1008 = vcmask 261127
    %1009 = vst.msk [vmem:[#allocation2] sm:$0x80] %vm1008, %v1006
    %v1010 = vld [vmem:[#allocation2] sm:$0xff]
    %v1011 = vld [vmem:[%s4] sm:$0xff]
    %v1012 = vld [vmem:[%s4 + $0x8] sm:$0xff]
    %v1013 = vld [vmem:[%s4 + $0x10] sm:$0xff]
    %v1014 = vld [vmem:[%s4 + $0x18] sm:$0xff]
    %v1015 = vld [vmem:[%s5] sm:$0x1]
    %v1017 = vlaneseq
    %v1018 = vshrl.u32 %v1017, 7
    %v1019 = vsub.s32 0, %v1018
    %v1020 = vrot.slane %v1015, %v1019
    %v1023 = vsel %vm124, %v1010, 0
    %1025 = vmatprep.subr.mxu0 0.0
    %1026 = vmatpush1.msra.mxu0 0.0
    %1027 = vmatprep.subr.mxu0 0.0
    %1028 = vmatpush1.msra.mxu0 0.0
    %1029 = vmatprep.subr.mxu0 0.0
    %1030 = vmatpush1.msra.mxu0 0.0
    %1031 = vmatprep.subr.mxu0 0.0
    %1032 = vmatpush1.msra.mxu0 0.0
    %1033 = vmatprep.subr.mxu0 0.0
    %1034 = vmatpush1.msra.mxu0 0.0
    %1035 = vmatprep.subr.mxu0 0.0
    %1036 = vmatpush1.msra.mxu0 0.0
    %1037 = vmatprep.subr.mxu0 0.0
    %1038 = vmatpush1.msra.mxu0 0.0
    %1039 = vmatprep.subr.mxu0 0.0
    %1040 = vmatpush1.msra.mxu0 0.0
    %1041 = vmatprep.subr.mxu0 0.0
    %1042 = vmatpush1.msra.mxu0 0.0
    %1043 = vmatprep.subr.mxu0 0.0
    %1044 = vmatpush1.msra.mxu0 0.0
    %1045 = vmatprep.subr.mxu0 0.0
    %1046 = vmatpush1.msra.mxu0 0.0
    %1047 = vmatprep.subr.mxu0 0.0
    %1048 = vmatpush1.msra.mxu0 0.0
    %1049 = vmatprep.subr.mxu0 0.0
    %1050 = vmatpush1.msra.mxu0 %v1014
    %1051 = vmatprep.subr.mxu0 0.0
    %1052 = vmatpush1.msra.mxu0 %v1013
    %1053 = vmatprep.subr.mxu0 0.0
    %1054 = vmatpush1.msra.mxu0 %v1012
    %1055 = vmatprep.subr.mxu0 0.0
    %1056 = vmatpush1.msra.mxu0 %v1011
    %1057 = vmatprep.subr.mxu0 0.0
    %1058 = vmatpush2.msra.mxu0 0.0
    %1059 = vmatprep.subr.mxu0 0.0
    %1060 = vmatpush2.msra.mxu0 0.0
    %1061 = vmatprep.subr.mxu0 0.0
    %1062 = vmatpush2.msra.mxu0 0.0
    %1063 = vmatprep.subr.mxu0 0.0
    %1064 = vmatpush2.msra.mxu0 0.0
    %1065 = vmatprep.subr.mxu0 0.0
    %1066 = vmatpush2.msra.mxu0 0.0
    %1067 = vmatprep.subr.mxu0 0.0
    %1068 = vmatpush2.msra.mxu0 0.0
    %1069 = vmatprep.subr.mxu0 0.0
    %1070 = vmatpush2.msra.mxu0 0.0
    %1071 = vmatprep.subr.mxu0 0.0
    %1072 = vmatpush2.msra.mxu0 0.0
    %1073 = vmatprep.subr.mxu0 0.0
    %1074 = vmatpush2.msra.mxu0 0.0
    %1075 = vmatprep.subr.mxu0 0.0
    %1076 = vmatpush2.msra.mxu0 0.0
    %1077 = vmatprep.subr.mxu0 0.0
    %1078 = vmatpush2.msra.mxu0 0.0
    %1079 = vmatprep.subr.mxu0 0.0
    %1080 = vmatpush2.msra.mxu0 0.0
    %1081 = vmatprep.subr.mxu0 0.0
    %1082 = vmatpush2.msra.mxu0 0.0
    %1083 = vmatprep.subr.mxu0 0.0
    %1084 = vmatpush2.msra.mxu0 0.0
    %1085 = vmatprep.subr.mxu0 0.0
    %1086 = vmatpush2.msra.mxu0 0.0
    %1087 = vmatprep.subr.mxu0 0.0
    %1088 = vmatpush2.msra.mxu0 0.0
    %1089 = vmatprep.mubr.f32.mxu0 0.0
    %1090 = vmatmul.mubr.f32.gmra.mxu0 %v1023
    %v1091 = vpop.f32.mrf.mxu0
    %v1092 = vadd.f32 %v1020, %v1091
    %v1093 = vpop.f32.mrf.mxu0
    %1094 = vdwg.mxu0
    %vm1095 = vcmask 64512
    %1096 = vst.msk [vmem:[#allocation6] sm:$0xff] %vm1095, %v1092
    // Predicated region
    $region30: #{rnn_forward.1} parent=1 // pred_check
      _
    $region31: #{rnn_forward.1} parent=1 // pred_check_branch
      %1098 = sbr.rel (0) target = $region33
    $region32: #{rnn_forward.1} parent=1 // pred_region
      %s1100 = ssub.s32 128, 128
      %1101 = vsyncadd [#allocation5], %s1100
      %s1103 = sshll.u32 [#allocation6], 4
      %s1104 = int_to_ptr.vmem [resolvable:$true] %s1103
      %1106 = dma.vmem_to_hbm [thread:$0]  %s1104, 128, %s6, [#allocation5]
    $region33: #{rnn_forward.1} parent=1 // pred_fallthru
      _
    // Predicated region
    $region34: #{rnn_forward.1} parent=1 // pred_check
      _
    $region35: #{rnn_forward.1} parent=1 // pred_check_branch
      %1108 = sbr.rel (0) target = $region37
    $region36: #{rnn_forward.1} parent=1 // pred_region
      %1109 = dma.done [#allocation5], 128
    $region37: #{rnn_forward.1} parent=1 // pred_fallthru
      _
    %1110 = vsyncpa [#allocation4], 1
    %1111 = vsyncpa [#allocation5], 1

</llo_original>
